<compile_context>
chip_gen: v7x
topology: tpu7x:2x2x1
jax: 0.10.0
libtpu: 0.0.40
codegen_flags: <defaults>
</compile_context>

<pallas_src>
import jax
import jax.numpy as jnp
from jax.experimental import pallas as pl
from jax.experimental.pallas import tpu as pltpu

# True layer dimensions of the PyTorch Model: in -> L1 -> L2 -> L3 -> L4(out)
DIMS = (21, 17, 13, 9, 5)
FPAD = 32   # padded feature width (sublane-aligned K) for input/hidden dims
OPAD = 8    # padded output lane width stored by the kernel (real probs: 0:5)


def mlp_kernel(x_ref, w_ref, b_ref, o_ref):
    """Whole 4-layer MLP forward for one (tb, 32) batch tile.

    x_ref: (tb, 32)     f32 input rows (features 21..31 are zero padding)
    w_ref: (4, 32, 32)  zero-padded weights; layer l at [l, :in_l, :out_l]
    b_ref: (4, 1, 32)   zero-padded biases
    o_ref: (tb, 8)      narrow softmax output; real probs in lanes 0:5
    """
    x = x_ref[...]  # (tb, 32)

    # layer1 + ReLU (K = 32, sublane aligned; padded rows/cols are zero so the
    # padded math is numerically identical to the unpadded matmul)
    h = jnp.dot(x, w_ref[0], preferred_element_type=jnp.float32) + b_ref[0]
    h = jnp.maximum(h, 0.0)

    # dropout(p=0.5): identity in eval/inference mode
    # TODO(synk): training-mode dropout (random mask + 1/(1-p) scale) not
    #             emitted; forward here matches model.eval() semantics.

    # layers 2 and 3 + ReLU (padded activation lanes stay exactly 0 through
    # ReLU, so full (32, 32) slabs are exact)
    h = jnp.maximum(
        jnp.dot(h, w_ref[1], preferred_element_type=jnp.float32) + b_ref[1], 0.0)
    h = jnp.maximum(
        jnp.dot(h, w_ref[2], preferred_element_type=jnp.float32) + b_ref[2], 0.0)

    # layer4 logits, then softmax restricted to a narrow 8-lane slab.
    logits = jnp.dot(h, w_ref[3], preferred_element_type=jnp.float32) + b_ref[3]
    logits = logits[:, :OPAD]                                   # (tb, 8)
    lane = jax.lax.broadcasted_iota(jnp.int32, logits.shape, 1)
    logits = jnp.where(lane < DIMS[4], logits, jnp.float32(-1e30))  # mask pads
    m = jnp.max(logits, axis=-1, keepdims=True)
    e = jnp.exp(logits - m)
    o_ref[...] = (e / jnp.sum(e, axis=-1, keepdims=True)).astype(o_ref.dtype)


def _round_up(n, m):
    return ((n + m - 1) // m) * m


def _choose_tiling(B, tb_max=2048):
    """Balanced batch tiling: tb multiple of 8, minimal padding waste, and
    >= 2 tiles whenever B >= 16 so v7x megacore sharding has work."""
    min_tiles = 2 if B >= 16 else 1
    num_tiles = max(-(-B // tb_max), min_tiles)
    tb = _round_up(-(-B // num_tiles), 8)
    return tb, tb * num_tiles, num_tiles


def mlp_forward(x, w_packed, b_packed, tb_max=2048):
    """x: (B, 21) f32. Returns (B, 5) f32 softmax probabilities."""
    B, Fin = x.shape
    tb, Bp, num_tiles = _choose_tiling(B, tb_max)

    # Pad batch to Bp rows and features to 32 lanes (sublane-aligned K).
    x = jnp.pad(x.astype(jnp.float32), ((0, Bp - B), (0, FPAD - Fin)))

    out = pl.pallas_call(
        mlp_kernel,
        out_shape=jax.ShapeDtypeStruct((Bp, OPAD), jnp.float32),
        grid=(num_tiles,),
        in_specs=[
            pl.BlockSpec((tb, FPAD), lambda i: (i, 0)),          # batch tile of x
            pl.BlockSpec((4, FPAD, FPAD), lambda i: (0, 0, 0)),  # weights (resident)
            pl.BlockSpec((4, 1, FPAD), lambda i: (0, 0, 0)),     # biases (resident)
        ],
        out_specs=pl.BlockSpec((tb, OPAD), lambda i: (i, 0)),
        compiler_params=pltpu.CompilerParams(
            dimension_semantics=("parallel",)),                  # megacore on v7x
    )(x, w_packed, b_packed)
    return out[:B, :DIMS[4]]


def pack_params(params):
    """Pack 4 (W, b) pairs into zero-padded (4,32,32) and (4,1,32) slabs."""
    (w1, b1, w2, b2, w3, b3, w4, b4) = params
    ws = (w1, w2, w3, w4)
    bs = (b1, b2, b3, b4)
    wp = jnp.zeros((4, FPAD, FPAD), jnp.float32)
    bp = jnp.zeros((4, 1, FPAD), jnp.float32)
    for l in range(4):
        fi, fo = DIMS[l], DIMS[l + 1]
        wp = wp.at[l, :fi, :fo].set(ws[l].astype(jnp.float32))
        bp = bp.at[l, 0, :fo].set(bs[l].astype(jnp.float32))
    return wp, bp


def init_linear(key, fan_in, fan_out):
    # PyTorch nn.Linear default init: U(-1/sqrt(fan_in), 1/sqrt(fan_in)).
    kw, kb = jax.random.split(key)
    bound = 1.0 / (fan_in ** 0.5)
    w = jax.random.uniform(kw, (fan_in, fan_out), jnp.float32, -bound, bound)
    b = jax.random.uniform(kb, (fan_out,), jnp.float32, -bound, bound)
    return w, b


if __name__ == "__main__":
    key = jax.random.PRNGKey(0)
    k_x, k1, k2, k3, k4 = jax.random.split(key, 5)

    B = 8  # small demo batch
    x = jax.random.normal(k_x, (B, DIMS[0]), jnp.float32)

    w1, b1 = init_linear(k1, 21, 17)
    w2, b2 = init_linear(k2, 17, 13)
    w3, b3 = init_linear(k3, 13, 9)
    w4, b4 = init_linear(k4, 9, 5)
    params = (w1, b1, w2, b2, w3, b3, w4, b4)
    w_packed, b_packed = pack_params(params)

    y = mlp_forward(x, w_packed, b_packed)
    y = jax.block_until_ready(y)

    # pure-JAX reference check (unpadded math)
    def ref(x):
        h = jnp.maximum(x @ w1 + b1, 0.0)
        h = jnp.maximum(h @ w2 + b2, 0.0)
        h = jnp.maximum(h @ w3 + b3, 0.0)
        return jax.nn.softmax(h @ w4 + b4, axis=-1).astype(jnp.float32)

    y_ref = ref(x)
    assert y.shape == (B, 5) and y.dtype == jnp.float32
    assert jnp.allclose(y, y_ref, atol=1e-5, rtol=1e-5)
    assert jnp.allclose(jnp.sum(y, axis=-1), 1.0, atol=1e-5)

    print("KERNEL_OK")
</pallas_src>

<mosaic_0001>
module attributes {stable_mosaic.version = 11 : i64} {
  func.func @mlp_kernel(%arg0: i32, %arg1: memref<8x32xf32, #tpu.memory_space<vmem>>, %arg2: memref<4x32x32xf32, #tpu.memory_space<vmem>>, %arg3: memref<4x1x32xf32, #tpu.memory_space<vmem>>, %arg4: memref<8x8xf32, #tpu.memory_space<vmem>>) attributes {dimension_semantics = [#tpu.dimension_semantics<parallel>], iteration_bounds = array<i64: 1>, scalar_prefetch = 0 : i64, scratch_operands = 0 : i64, tpu.core_type = #tpu.core_type<tc>, window_params = [{transform_indices = @transform_0, window_bounds = array<i64: 8, 32>}, {pipeline_mode = #tpu.pipeline_mode<synchronous>, transform_indices = @transform_1, window_bounds = array<i64: 4, 32, 32>}, {pipeline_mode = #tpu.pipeline_mode<synchronous>, transform_indices = @transform_2, window_bounds = array<i64: 4, 1, 32>}, {transform_indices = @transform_3, window_bounds = array<i64: 8, 8>}]} {
    %c0 = arith.constant 0 : index
    %c0_0 = arith.constant 0 : index
    %0 = vector.load %arg1[%c0, %c0_0] : memref<8x32xf32, #tpu.memory_space<vmem>>, vector<8x32xf32>
    %c0_1 = arith.constant 0 : index
    %c0_2 = arith.constant 0 : index
    %c0_3 = arith.constant 0 : index
    %1 = vector.load %arg2[%c0_1, %c0_2, %c0_3] : memref<4x32x32xf32, #tpu.memory_space<vmem>>, vector<1x32x32xf32>
    %2 = vector.shape_cast %1 : vector<1x32x32xf32> to vector<32x32xf32>
    %cst = arith.constant dense<0.000000e+00> : vector<8x32xf32>
    %3 = tpu.matmul %0, %2, %cst {dimension_numbers = #tpu.dot_dimension_numbers<[1], [0], [0], [1], [0, 0, 1, 1], [], []>} : vector<8x32xf32>, vector<32x32xf32>, vector<8x32xf32> -> vector<8x32xf32>
    %c0_4 = arith.constant 0 : index
    %c0_5 = arith.constant 0 : index
    %c0_6 = arith.constant 0 : index
    %4 = vector.load %arg3[%c0_4, %c0_5, %c0_6] : memref<4x1x32xf32, #tpu.memory_space<vmem>>, vector<1x1x32xf32>
    %5 = vector.shape_cast %4 : vector<1x1x32xf32> to vector<1x32xf32>
    %6 = vector.broadcast %5 : vector<1x32xf32> to vector<8x32xf32>
    %7 = arith.addf %3, %6 : vector<8x32xf32>
    %cst_7 = arith.constant 0.000000e+00 : f32
    %8 = vector.broadcast %cst_7 : f32 to vector<8x32xf32>
    %9 = arith.maximumf %7, %8 : vector<8x32xf32>
    %c1 = arith.constant 1 : index
    %c0_8 = arith.constant 0 : index
    %c0_9 = arith.constant 0 : index
    %10 = vector.load %arg2[%c1, %c0_8, %c0_9] : memref<4x32x32xf32, #tpu.memory_space<vmem>>, vector<1x32x32xf32>
    %11 = vector.shape_cast %10 : vector<1x32x32xf32> to vector<32x32xf32>
    %cst_10 = arith.constant dense<0.000000e+00> : vector<8x32xf32>
    %12 = tpu.matmul %9, %11, %cst_10 {dimension_numbers = #tpu.dot_dimension_numbers<[1], [0], [0], [1], [0, 0, 1, 1], [], []>} : vector<8x32xf32>, vector<32x32xf32>, vector<8x32xf32> -> vector<8x32xf32>
    %c1_11 = arith.constant 1 : index
    %c0_12 = arith.constant 0 : index
    %c0_13 = arith.constant 0 : index
    %13 = vector.load %arg3[%c1_11, %c0_12, %c0_13] : memref<4x1x32xf32, #tpu.memory_space<vmem>>, vector<1x1x32xf32>
    %14 = vector.shape_cast %13 : vector<1x1x32xf32> to vector<1x32xf32>
    %15 = vector.broadcast %14 : vector<1x32xf32> to vector<8x32xf32>
    %16 = arith.addf %12, %15 : vector<8x32xf32>
    %cst_14 = arith.constant 0.000000e+00 : f32
    %17 = vector.broadcast %cst_14 : f32 to vector<8x32xf32>
    %18 = arith.maximumf %16, %17 : vector<8x32xf32>
    %c2 = arith.constant 2 : index
    %c0_15 = arith.constant 0 : index
    %c0_16 = arith.constant 0 : index
    %19 = vector.load %arg2[%c2, %c0_15, %c0_16] : memref<4x32x32xf32, #tpu.memory_space<vmem>>, vector<1x32x32xf32>
    %20 = vector.shape_cast %19 : vector<1x32x32xf32> to vector<32x32xf32>
    %cst_17 = arith.constant dense<0.000000e+00> : vector<8x32xf32>
    %21 = tpu.matmul %18, %20, %cst_17 {dimension_numbers = #tpu.dot_dimension_numbers<[1], [0], [0], [1], [0, 0, 1, 1], [], []>} : vector<8x32xf32>, vector<32x32xf32>, vector<8x32xf32> -> vector<8x32xf32>
    %c2_18 = arith.constant 2 : index
    %c0_19 = arith.constant 0 : index
    %c0_20 = arith.constant 0 : index
    %22 = vector.load %arg3[%c2_18, %c0_19, %c0_20] : memref<4x1x32xf32, #tpu.memory_space<vmem>>, vector<1x1x32xf32>
    %23 = vector.shape_cast %22 : vector<1x1x32xf32> to vector<1x32xf32>
    %24 = vector.broadcast %23 : vector<1x32xf32> to vector<8x32xf32>
    %25 = arith.addf %21, %24 : vector<8x32xf32>
    %cst_21 = arith.constant 0.000000e+00 : f32
    %26 = vector.broadcast %cst_21 : f32 to vector<8x32xf32>
    %27 = arith.maximumf %25, %26 : vector<8x32xf32>
    %c3 = arith.constant 3 : index
    %c0_22 = arith.constant 0 : index
    %c0_23 = arith.constant 0 : index
    %28 = vector.load %arg2[%c3, %c0_22, %c0_23] : memref<4x32x32xf32, #tpu.memory_space<vmem>>, vector<1x32x32xf32>
    %29 = vector.shape_cast %28 : vector<1x32x32xf32> to vector<32x32xf32>
    %cst_24 = arith.constant dense<0.000000e+00> : vector<8x32xf32>
    %30 = tpu.matmul %27, %29, %cst_24 {dimension_numbers = #tpu.dot_dimension_numbers<[1], [0], [0], [1], [0, 0, 1, 1], [], []>} : vector<8x32xf32>, vector<32x32xf32>, vector<8x32xf32> -> vector<8x32xf32>
    %c3_25 = arith.constant 3 : index
    %c0_26 = arith.constant 0 : index
    %c0_27 = arith.constant 0 : index
    %31 = vector.load %arg3[%c3_25, %c0_26, %c0_27] : memref<4x1x32xf32, #tpu.memory_space<vmem>>, vector<1x1x32xf32>
    %32 = vector.shape_cast %31 : vector<1x1x32xf32> to vector<1x32xf32>
    %33 = vector.broadcast %32 : vector<1x32xf32> to vector<8x32xf32>
    %34 = arith.addf %30, %33 : vector<8x32xf32>
    %35 = vector.extract_strided_slice %34 {offsets = [0, 0], sizes = [8, 8], strides = [1, 1]} : vector<8x32xf32> to vector<8x8xf32>
    %36 = tpu.iota {dimensions = array<i32: 1>} : vector<8x8xi32>
    %c5_i32 = arith.constant 5 : i32
    %37 = vector.broadcast %c5_i32 : i32 to vector<8x8xi32>
    %38 = arith.cmpi slt, %36, %37 : vector<8x8xi32>
    %cst_28 = arith.constant -1.000000e+30 : f32
    %39 = vector.broadcast %cst_28 : f32 to vector<8x8xf32>
    %40 = arith.select %38, %35, %39 : vector<8x8xi1>, vector<8x8xf32>
    %cst_29 = arith.constant dense<0xFF800000> : vector<8xf32>
    %41 = vector.multi_reduction <maximumf>, %40, %cst_29 [1] : vector<8x8xf32> to vector<8xf32>
    %42 = vector.shape_cast %41 : vector<8xf32> to vector<8x1xf32>
    %43 = vector.broadcast %42 : vector<8x1xf32> to vector<8x8xf32>
    %44 = arith.subf %40, %43 : vector<8x8xf32>
    %45 = math.exp %44 : vector<8x8xf32>
    %cst_30 = arith.constant dense<0.000000e+00> : vector<8xf32>
    %46 = vector.multi_reduction <add>, %45, %cst_30 [1] : vector<8x8xf32> to vector<8xf32>
    %47 = vector.shape_cast %46 : vector<8xf32> to vector<8x1xf32>
    %48 = vector.broadcast %47 : vector<8x1xf32> to vector<8x8xf32>
    %49 = arith.divf %45, %48 : vector<8x8xf32>
    %c0_31 = arith.constant 0 : index
    %c0_32 = arith.constant 0 : index
    %50 = vector.load %arg4[%c0_31, %c0_32] : memref<8x8xf32, #tpu.memory_space<vmem>>, vector<8x8xf32>
    tpu.vector_store %arg4[%c0_31, %c0_32], %49 {strides = array<i32>} : memref<8x8xf32, #tpu.memory_space<vmem>>, vector<8x8xf32>,
    return
  }
  func.func @transform_0(%arg0: i32) -> (i32, i32) {
    %c0_i32 = arith.constant 0 : i32
    %c0_i32_0 = arith.constant 0 : i32
    return %arg0, %c0_i32 : i32, i32
  }
  func.func @transform_1(%arg0: i32) -> (i32, i32, i32) {
    %c0_i32 = arith.constant 0 : i32
    %c0_i32_0 = arith.constant 0 : i32
    %c0_i32_1 = arith.constant 0 : i32
    %c0_i32_2 = arith.constant 0 : i32
    return %c0_i32, %c0_i32_0, %c0_i32_1 : i32, i32, i32
  }
  func.func @transform_2(%arg0: i32) -> (i32, i32, i32) {
    %c0_i32 = arith.constant 0 : i32
    %c0_i32_0 = arith.constant 0 : i32
    %c0_i32_1 = arith.constant 0 : i32
    %c0_i32_2 = arith.constant 0 : i32
    return %c0_i32, %c0_i32_0, %c0_i32_1 : i32, i32, i32
  }
  func.func @transform_3(%arg0: i32) -> (i32, i32) {
    %c0_i32 = arith.constant 0 : i32
    %c0_i32_0 = arith.constant 0 : i32
    return %arg0, %c0_i32 : i32, i32
  }
}

</mosaic_0001>

<llo_original>
// kernel: tpu_custom_call.1
$region0: #{tpu_custom_call.1}
  #allocation0 [shape = 'u32[]', space=smem, size = 0x4, offset = 0x4, fixed_abs, tag = 'smem constant byte address 0x4 - core index']
  #allocation1 [shape = 'u32[144,128]{1,0:T(1,128)}', space=vmem, size = 0x12000, scoped, tag = 'internal scratch']
  %s0 = inlined_call_operand.hbm [shape: f32[8,32], index: 0, kind: input, shape index: {}]
  %s1 = inlined_call_operand.hbm [shape: f32[4,32,32], index: 1, kind: input, shape index: {}]
  %s2 = inlined_call_operand.vmem [shape: f32[4,1,32], index: 2, kind: input, shape index: {}]
  %s3 = inlined_call_operand.hbm [shape: f32[8,8], index: 3, kind: output, shape index: {}]
  %s4 = sld [smem:[#allocation0]]
  $region30: #{tpu_custom_call.1} parent=0
    _
  %s6 = ssub.s32 1, %s4
  %s7 = scalar_select 0, %s6, %s4
  $region1: #{tpu_custom_call.1} parent=0
    #allocation2 [shape = 'u8[4096]{0}', space=vmem, size = 0x1000, scoped, tag = 'input window, operand 0, single buffered']
    #allocation3 [shape = 's32[1]{0}', space=sflag, size = 0x4, scoped, tag = 'scoped memory for tpu_custom_call.1']
    #allocation4 [shape = 's32[1]{0}', space=sflag, size = 0x4, scoped, tag = 'scoped memory for tpu_custom_call.1']
    #allocation5 [shape = 'u8[65536]{0}', space=vmem, size = 0x10000, scoped, tag = 'input window, operand 1, single buffered']
    #allocation6 [shape = 's32[1]{0}', space=sflag, size = 0x4, scoped, tag = 'scoped memory for tpu_custom_call.1']
    #allocation7 [shape = 'u8[4096]{0}', space=vmem, size = 0x1000, scoped, tag = 'output window, operand 0, single buffered']
    %8 = vsyncpa [#allocation3], 0
    %9 = vsyncpa [#allocation6], 0
    %10 = vsyncpa [#allocation4], 0
    // Predicated region
    $region2: #{tpu_custom_call.1} parent=1 // pred_check
      _
    $region3: #{tpu_custom_call.1} parent=1 // pred_check_branch
      %12 = sbr.rel (0) target = $region5
    $region4: #{tpu_custom_call.1} parent=1 // pred_region
      %s14 = ssub.s32 128, 128
      %15 = vsyncadd [#allocation3], %s14
      %s17 = sshll.u32 [#allocation2], 4
      %s18 = int_to_ptr.vmem [resolvable:$true] %s17
      %20 = dma.hbm_to_vmem [thread:$0]  %s0, 128, %s18, [#allocation3]
    $region5: #{tpu_custom_call.1} parent=1 // pred_fallthru
      _
    // Predicated region
    $region6: #{tpu_custom_call.1} parent=1 // pred_check
      _
    $region7: #{tpu_custom_call.1} parent=1 // pred_check_branch
      %22 = sbr.rel (0) target = $region9
    $region8: #{tpu_custom_call.1} parent=1 // pred_region
      %s24 = ssub.s32 2048, 2048
      %25 = vsyncadd [#allocation6], %s24
      %s26 = sshll.u32 [#allocation5], 4
      %s27 = int_to_ptr.vmem [resolvable:$true] %s26
      %32 = dma.hbm_to_vmem [thread:$0]  %s1, 2048, %s27, [#allocation6], 128, 128, 8
    $region9: #{tpu_custom_call.1} parent=1 // pred_fallthru
      _
    // Predicated region
    $region10: #{tpu_custom_call.1} parent=1 // pred_check
      _
    $region11: #{tpu_custom_call.1} parent=1 // pred_check_branch
      %34 = sbr.rel (0) target = $region13
    $region12: #{tpu_custom_call.1} parent=1 // pred_region
      _
    $region13: #{tpu_custom_call.1} parent=1 // pred_fallthru
      _
    // Predicated region
    $region14: #{tpu_custom_call.1} parent=1 // pred_check
      _
    $region15: #{tpu_custom_call.1} parent=1 // pred_check_branch
      %36 = sbr.rel (0) target = $region17
    $region16: #{tpu_custom_call.1} parent=1 // pred_region
      %37 = dma.done [#allocation3], 128
    $region17: #{tpu_custom_call.1} parent=1 // pred_fallthru
      _
    // Predicated region
    $region18: #{tpu_custom_call.1} parent=1 // pred_check
      _
    $region19: #{tpu_custom_call.1} parent=1 // pred_check_branch
      %39 = sbr.rel (0) target = $region21
    $region20: #{tpu_custom_call.1} parent=1 // pred_region
      %40 = dma.done [#allocation6], 2048
    $region21: #{tpu_custom_call.1} parent=1 // pred_fallthru
      _
    %v41 = vld [vmem:[#allocation2] sm:$0xff]
    %v42 = vld [vmem:[#allocation5] sm:$0xff]
    %v43 = vld [vmem:[#allocation5 + $0x8] sm:$0xff]
    %v44 = vld [vmem:[#allocation5 + $0x10] sm:$0xff]
    %v45 = vld [vmem:[#allocation5 + $0x18] sm:$0xff]
    %v46 = vld [vmem:[%s2] sm:$0x1]
    %v48 = vlaneseq
    %v49 = vshrl.u32 %v48, 7
    %v50 = vsub.s32 0, %v49
    %v51 = vrot.slane %v46, %v50
    %vm53 = vcmask 261120
    %v55 = vsel %vm53, %v41, 0
    %57 = vmatprep.subr.mxu0 0.0
    %58 = vmatpush1.msra.mxu0 %v42
    %59 = vmatprep.subr.mxu0 0.0
    %60 = vmatpush1.msra.mxu0 %v43
    %61 = vmatprep.subr.mxu0 0.0
    %62 = vmatpush1.msra.mxu0 %v44
    %63 = vmatprep.subr.mxu0 0.0
    %64 = vmatpush1.msra.mxu0 %v45
    %65 = vmatprep.subr.mxu0 0.0
    %66 = vmatpush1.msra.mxu0 0.0
    %67 = vmatprep.subr.mxu0 0.0
    %68 = vmatpush1.msra.mxu0 0.0
    %69 = vmatprep.subr.mxu0 0.0
    %70 = vmatpush1.msra.mxu0 0.0
    %71 = vmatprep.subr.mxu0 0.0
    %72 = vmatpush1.msra.mxu0 0.0
    %73 = vmatprep.subr.mxu0 0.0
    %74 = vmatpush1.msra.mxu0 0.0
    %75 = vmatprep.subr.mxu0 0.0
    %76 = vmatpush1.msra.mxu0 0.0
    %77 = vmatprep.subr.mxu0 0.0
    %78 = vmatpush1.msra.mxu0 0.0
    %79 = vmatprep.subr.mxu0 0.0
    %80 = vmatpush1.msra.mxu0 0.0
    %81 = vmatprep.subr.mxu0 0.0
    %82 = vmatpush1.msra.mxu0 0.0
    %83 = vmatprep.subr.mxu0 0.0
    %84 = vmatpush1.msra.mxu0 0.0
    %85 = vmatprep.subr.mxu0 0.0
    %86 = vmatpush1.msra.mxu0 0.0
    %87 = vmatprep.subr.mxu0 0.0
    %88 = vmatpush1.msra.mxu0 0.0
    %89 = vmatprep.subr.mxu0 0.0
    %90 = vmatpush1.msra.mxu0 0.0
    %91 = vmatprep.subr.mxu0 0.0
    %92 = vmatpush1.msra.mxu0 0.0
    %93 = vmatprep.subr.mxu0 0.0
    %94 = vmatpush1.msra.mxu0 0.0
    %95 = vmatprep.subr.mxu0 0.0
    %96 = vmatpush1.msra.mxu0 0.0
    %97 = vmatprep.subr.mxu0 0.0
    %98 = vmatpush1.msra.mxu0 0.0
    %99 = vmatprep.subr.mxu0 0.0
    %100 = vmatpush1.msra.mxu0 0.0
    %101 = vmatprep.subr.mxu0 0.0
    %102 = vmatpush1.msra.mxu0 0.0
    %103 = vmatprep.subr.mxu0 0.0
    %104 = vmatpush1.msra.mxu0 0.0
    %105 = vmatprep.subr.mxu0 0.0
    %106 = vmatpush1.msra.mxu0 0.0
    %107 = vmatprep.subr.mxu0 0.0
    %108 = vmatpush1.msra.mxu0 0.0
    %109 = vmatprep.subr.mxu0 0.0
    %110 = vmatpush1.msra.mxu0 0.0
    %111 = vmatprep.subr.mxu0 0.0
    %112 = vmatpush1.msra.mxu0 0.0
    %113 = vmatprep.subr.mxu0 0.0
    %114 = vmatpush1.msra.mxu0 0.0
    %115 = vmatprep.subr.mxu0 0.0
    %116 = vmatpush1.msra.mxu0 0.0
    %117 = vmatprep.subr.mxu0 0.0
    %118 = vmatpush1.msra.mxu0 0.0
    %119 = vmatprep.subr.mxu0 0.0
    %120 = vmatpush1.msra.mxu0 0.0
    %121 = vmatprep.mubr.f32.mxu0 0.0
    %122 = vmatmul.mubr.f32.gmra.mrb[0].mxu0 %v55
    %v123 = vpop.f32.mrb[0].mxu0
    %v124 = vadd.f32 %v51, %v123
    %v125 = vpop.f32.mrb[0].mxu0
    %126 = vdwg.mxu0
    %v127 = vmax.f32 %v124, 0.0
    %s128 = scalar_lea.vmem [#allocation5], 32
    %v129 = vld [vmem:[%s128] sm:$0xff]
    %v130 = vld [vmem:[%s128 + $0x8] sm:$0xff]
    %v131 = vld [vmem:[%s128 + $0x10] sm:$0xff]
    %v132 = vld [vmem:[%s128 + $0x18] sm:$0xff]
    %s133 = scalar_lea.vmem %s2, 1
    %v134 = vld [vmem:[%s133] sm:$0x1]
    %v136 = vlaneseq
    %v137 = vshrl.u32 %v136, 7
    %v138 = vsub.s32 0, %v137
    %v139 = vrot.slane %v134, %v138
    %v142 = vsel %vm53, %v127, 0
    %144 = vmatprep.subr.mxu0 0.0
    %145 = vmatpush1.msra.mxu0 %v129
    %146 = vmatprep.subr.mxu0 0.0
    %147 = vmatpush1.msra.mxu0 %v130
    %148 = vmatprep.subr.mxu0 0.0
    %149 = vmatpush1.msra.mxu0 %v131
    %150 = vmatprep.subr.mxu0 0.0
    %151 = vmatpush1.msra.mxu0 %v132
    %152 = vmatprep.subr.mxu0 0.0
    %153 = vmatpush1.msra.mxu0 0.0
    %154 = vmatprep.subr.mxu0 0.0
    %155 = vmatpush1.msra.mxu0 0.0
    %156 = vmatprep.subr.mxu0 0.0
    %157 = vmatpush1.msra.mxu0 0.0
    %158 = vmatprep.subr.mxu0 0.0
    %159 = vmatpush1.msra.mxu0 0.0
    %160 = vmatprep.subr.mxu0 0.0
    %161 = vmatpush1.msra.mxu0 0.0
    %162 = vmatprep.subr.mxu0 0.0
    %163 = vmatpush1.msra.mxu0 0.0
    %164 = vmatprep.subr.mxu0 0.0
    %165 = vmatpush1.msra.mxu0 0.0
    %166 = vmatprep.subr.mxu0 0.0
    %167 = vmatpush1.msra.mxu0 0.0
    %168 = vmatprep.subr.mxu0 0.0
    %169 = vmatpush1.msra.mxu0 0.0
    %170 = vmatprep.subr.mxu0 0.0
    %171 = vmatpush1.msra.mxu0 0.0
    %172 = vmatprep.subr.mxu0 0.0
    %173 = vmatpush1.msra.mxu0 0.0
    %174 = vmatprep.subr.mxu0 0.0
    %175 = vmatpush1.msra.mxu0 0.0
    %176 = vmatprep.subr.mxu0 0.0
    %177 = vmatpush1.msra.mxu0 0.0
    %178 = vmatprep.subr.mxu0 0.0
    %179 = vmatpush1.msra.mxu0 0.0
    %180 = vmatprep.subr.mxu0 0.0
    %181 = vmatpush1.msra.mxu0 0.0
    %182 = vmatprep.subr.mxu0 0.0
    %183 = vmatpush1.msra.mxu0 0.0
    %184 = vmatprep.subr.mxu0 0.0
    %185 = vmatpush1.msra.mxu0 0.0
    %186 = vmatprep.subr.mxu0 0.0
    %187 = vmatpush1.msra.mxu0 0.0
    %188 = vmatprep.subr.mxu0 0.0
    %189 = vmatpush1.msra.mxu0 0.0
    %190 = vmatprep.subr.mxu0 0.0
    %191 = vmatpush1.msra.mxu0 0.0
    %192 = vmatprep.subr.mxu0 0.0
    %193 = vmatpush1.msra.mxu0 0.0
    %194 = vmatprep.subr.mxu0 0.0
    %195 = vmatpush1.msra.mxu0 0.0
    %196 = vmatprep.subr.mxu0 0.0
    %197 = vmatpush1.msra.mxu0 0.0
    %198 = vmatprep.subr.mxu0 0.0
    %199 = vmatpush1.msra.mxu0 0.0
    %200 = vmatprep.subr.mxu0 0.0
    %201 = vmatpush1.msra.mxu0 0.0
    %202 = vmatprep.subr.mxu0 0.0
    %203 = vmatpush1.msra.mxu0 0.0
    %204 = vmatprep.subr.mxu0 0.0
    %205 = vmatpush1.msra.mxu0 0.0
    %206 = vmatprep.subr.mxu0 0.0
    %207 = vmatpush1.msra.mxu0 0.0
    %208 = vmatprep.mubr.f32.mxu0 0.0
    %209 = vmatmul.mubr.f32.gmra.mrb[0].mxu0 %v142
    %v210 = vpop.f32.mrb[0].mxu0
    %v211 = vadd.f32 %v139, %v210
    %v212 = vpop.f32.mrb[0].mxu0
    %213 = vdwg.mxu0
    %v214 = vmax.f32 %v211, 0.0
    %s215 = scalar_lea.vmem [#allocation5], 64
    %v216 = vld [vmem:[%s215] sm:$0xff]
    %v217 = vld [vmem:[%s215 + $0x8] sm:$0xff]
    %v218 = vld [vmem:[%s215 + $0x10] sm:$0xff]
    %v219 = vld [vmem:[%s215 + $0x18] sm:$0xff]
    %s220 = scalar_lea.vmem %s2, 2
    %v221 = vld [vmem:[%s220] sm:$0x1]
    %v223 = vlaneseq
    %v224 = vshrl.u32 %v223, 7
    %v225 = vsub.s32 0, %v224
    %v226 = vrot.slane %v221, %v225
    %v229 = vsel %vm53, %v214, 0
    %231 = vmatprep.subr.mxu0 0.0
    %232 = vmatpush1.msra.mxu0 %v216
    %233 = vmatprep.subr.mxu0 0.0
    %234 = vmatpush1.msra.mxu0 %v217
    %235 = vmatprep.subr.mxu0 0.0
    %236 = vmatpush1.msra.mxu0 %v218
    %237 = vmatprep.subr.mxu0 0.0
    %238 = vmatpush1.msra.mxu0 %v219
    %239 = vmatprep.subr.mxu0 0.0
    %240 = vmatpush1.msra.mxu0 0.0
    %241 = vmatprep.subr.mxu0 0.0
    %242 = vmatpush1.msra.mxu0 0.0
    %243 = vmatprep.subr.mxu0 0.0
    %244 = vmatpush1.msra.mxu0 0.0
    %245 = vmatprep.subr.mxu0 0.0
    %246 = vmatpush1.msra.mxu0 0.0
    %247 = vmatprep.subr.mxu0 0.0
    %248 = vmatpush1.msra.mxu0 0.0
    %249 = vmatprep.subr.mxu0 0.0
    %250 = vmatpush1.msra.mxu0 0.0
    %251 = vmatprep.subr.mxu0 0.0
    %252 = vmatpush1.msra.mxu0 0.0
    %253 = vmatprep.subr.mxu0 0.0
    %254 = vmatpush1.msra.mxu0 0.0
    %255 = vmatprep.subr.mxu0 0.0
    %256 = vmatpush1.msra.mxu0 0.0
    %257 = vmatprep.subr.mxu0 0.0
    %258 = vmatpush1.msra.mxu0 0.0
    %259 = vmatprep.subr.mxu0 0.0
    %260 = vmatpush1.msra.mxu0 0.0
    %261 = vmatprep.subr.mxu0 0.0
    %262 = vmatpush1.msra.mxu0 0.0
    %263 = vmatprep.subr.mxu0 0.0
    %264 = vmatpush1.msra.mxu0 0.0
    %265 = vmatprep.subr.mxu0 0.0
    %266 = vmatpush1.msra.mxu0 0.0
    %267 = vmatprep.subr.mxu0 0.0
    %268 = vmatpush1.msra.mxu0 0.0
    %269 = vmatprep.subr.mxu0 0.0
    %270 = vmatpush1.msra.mxu0 0.0
    %271 = vmatprep.subr.mxu0 0.0
    %272 = vmatpush1.msra.mxu0 0.0
    %273 = vmatprep.subr.mxu0 0.0
    %274 = vmatpush1.msra.mxu0 0.0
    %275 = vmatprep.subr.mxu0 0.0
    %276 = vmatpush1.msra.mxu0 0.0
    %277 = vmatprep.subr.mxu0 0.0
    %278 = vmatpush1.msra.mxu0 0.0
    %279 = vmatprep.subr.mxu0 0.0
    %280 = vmatpush1.msra.mxu0 0.0
    %281 = vmatprep.subr.mxu0 0.0
    %282 = vmatpush1.msra.mxu0 0.0
    %283 = vmatprep.subr.mxu0 0.0
    %284 = vmatpush1.msra.mxu0 0.0
    %285 = vmatprep.subr.mxu0 0.0
    %286 = vmatpush1.msra.mxu0 0.0
    %287 = vmatprep.subr.mxu0 0.0
    %288 = vmatpush1.msra.mxu0 0.0
    %289 = vmatprep.subr.mxu0 0.0
    %290 = vmatpush1.msra.mxu0 0.0
    %291 = vmatprep.subr.mxu0 0.0
    %292 = vmatpush1.msra.mxu0 0.0
    %293 = vmatprep.subr.mxu0 0.0
    %294 = vmatpush1.msra.mxu0 0.0
    %295 = vmatprep.mubr.f32.mxu0 0.0
    %296 = vmatmul.mubr.f32.gmra.mrb[0].mxu0 %v229
    %v297 = vpop.f32.mrb[0].mxu0
    %v298 = vadd.f32 %v226, %v297
    %v299 = vpop.f32.mrb[0].mxu0
    %300 = vdwg.mxu0
    %v301 = vmax.f32 %v298, 0.0
    %s302 = scalar_lea.vmem [#allocation5], 96
    %v303 = vld [vmem:[%s302] sm:$0xff]
    %v304 = vld [vmem:[%s302 + $0x8] sm:$0xff]
    %v305 = vld [vmem:[%s302 + $0x10] sm:$0xff]
    %v306 = vld [vmem:[%s302 + $0x18] sm:$0xff]
    %s307 = scalar_lea.vmem %s2, 3
    %v308 = vld [vmem:[%s307] sm:$0x1]
    %v310 = vlaneseq
    %v311 = vshrl.u32 %v310, 7
    %v312 = vsub.s32 0, %v311
    %v313 = vrot.slane %v308, %v312
    %v316 = vsel %vm53, %v301, 0
    %318 = vmatprep.subr.mxu0 0.0
    %319 = vmatpush1.msra.mxu0 %v303
    %320 = vmatprep.subr.mxu0 0.0
    %321 = vmatpush1.msra.mxu0 %v304
    %322 = vmatprep.subr.mxu0 0.0
    %323 = vmatpush1.msra.mxu0 %v305
    %324 = vmatprep.subr.mxu0 0.0
    %325 = vmatpush1.msra.mxu0 %v306
    %326 = vmatprep.subr.mxu0 0.0
    %327 = vmatpush1.msra.mxu0 0.0
    %328 = vmatprep.subr.mxu0 0.0
    %329 = vmatpush1.msra.mxu0 0.0
    %330 = vmatprep.subr.mxu0 0.0
    %331 = vmatpush1.msra.mxu0 0.0
    %332 = vmatprep.subr.mxu0 0.0
    %333 = vmatpush1.msra.mxu0 0.0
    %334 = vmatprep.subr.mxu0 0.0
    %335 = vmatpush1.msra.mxu0 0.0
    %336 = vmatprep.subr.mxu0 0.0
    %337 = vmatpush1.msra.mxu0 0.0
    %338 = vmatprep.subr.mxu0 0.0
    %339 = vmatpush1.msra.mxu0 0.0
    %340 = vmatprep.subr.mxu0 0.0
    %341 = vmatpush1.msra.mxu0 0.0
    %342 = vmatprep.subr.mxu0 0.0
    %343 = vmatpush1.msra.mxu0 0.0
    %344 = vmatprep.subr.mxu0 0.0
    %345 = vmatpush1.msra.mxu0 0.0
    %346 = vmatprep.subr.mxu0 0.0
    %347 = vmatpush1.msra.mxu0 0.0
    %348 = vmatprep.subr.mxu0 0.0
    %349 = vmatpush1.msra.mxu0 0.0
    %350 = vmatprep.subr.mxu0 0.0
    %351 = vmatpush1.msra.mxu0 0.0
    %352 = vmatprep.subr.mxu0 0.0
    %353 = vmatpush1.msra.mxu0 0.0
    %354 = vmatprep.subr.mxu0 0.0
    %355 = vmatpush1.msra.mxu0 0.0
    %356 = vmatprep.subr.mxu0 0.0
    %357 = vmatpush1.msra.mxu0 0.0
    %358 = vmatprep.subr.mxu0 0.0
    %359 = vmatpush1.msra.mxu0 0.0
    %360 = vmatprep.subr.mxu0 0.0
    %361 = vmatpush1.msra.mxu0 0.0
    %362 = vmatprep.subr.mxu0 0.0
    %363 = vmatpush1.msra.mxu0 0.0
    %364 = vmatprep.subr.mxu0 0.0
    %365 = vmatpush1.msra.mxu0 0.0
    %366 = vmatprep.subr.mxu0 0.0
    %367 = vmatpush1.msra.mxu0 0.0
    %368 = vmatprep.subr.mxu0 0.0
    %369 = vmatpush1.msra.mxu0 0.0
    %370 = vmatprep.subr.mxu0 0.0
    %371 = vmatpush1.msra.mxu0 0.0
    %372 = vmatprep.subr.mxu0 0.0
    %373 = vmatpush1.msra.mxu0 0.0
    %374 = vmatprep.subr.mxu0 0.0
    %375 = vmatpush1.msra.mxu0 0.0
    %376 = vmatprep.subr.mxu0 0.0
    %377 = vmatpush1.msra.mxu0 0.0
    %378 = vmatprep.subr.mxu0 0.0
    %379 = vmatpush1.msra.mxu0 0.0
    %380 = vmatprep.subr.mxu0 0.0
    %381 = vmatpush1.msra.mxu0 0.0
    %382 = vmatprep.mubr.f32.mxu0 0.0
    %383 = vmatmul.mubr.f32.gmra.mrb[0].mxu0 %v316
    %v384 = vpop.f32.mrb[0].mxu0
    %v385 = vadd.f32 %v313, %v384
    %v386 = vpop.f32.mrb[0].mxu0
    %387 = vdwg.mxu0
    %v388 = vlaneseq
    %v389 = vand.u32 %v388, 127
    %vm390 = vcmp.lt.s32.totalorder %v389, 5
    %v391 = vsel %vm390, %v385, -1e+30
    %vm392 = vcmask 64512
    %v393 = vsel %vm392, %v391, -inf
    %394 = vmax.xlane.f32.xlu0 %v393
    %v395 = vpop.xlane.xlu0 %394
    %v396 = vsub.f32 %v391, %v395
    %v397 = vmul.f32 %v396, 1.442695
    %v398 = vpow.pop %v397
    %v399 = vsel %vm392, %v398, 0.0
    %400 = vadd.xlane.f32.xlu0 %v399
    %v401 = vpop.xlane.xlu0 %400
    %v402 = vrcp.pop %v401
    %v403 = vmul.f32 %v398, %v402
    %404 = vst.msk [vmem:[#allocation7] sm:$0xff] %vm392, %v403
    // Predicated region
    $region22: #{tpu_custom_call.1} parent=1 // pred_check
      _
    $region23: #{tpu_custom_call.1} parent=1 // pred_check_branch
      %406 = sbr.rel (0) target = $region25
    $region24: #{tpu_custom_call.1} parent=1 // pred_region
      %s408 = ssub.s32 128, 128
      %409 = vsyncadd [#allocation4], %s408
      %s411 = sshll.u32 [#allocation7], 4
      %s412 = int_to_ptr.vmem [resolvable:$true] %s411
      %414 = dma.vmem_to_hbm [thread:$0]  %s412, 128, %s3, [#allocation4]
    $region25: #{tpu_custom_call.1} parent=1 // pred_fallthru
      _
    // Predicated region
    $region26: #{tpu_custom_call.1} parent=1 // pred_check
      _
    $region27: #{tpu_custom_call.1} parent=1 // pred_check_branch
      %416 = sbr.rel (0) target = $region29
    $region28: #{tpu_custom_call.1} parent=1 // pred_region
      %417 = dma.done [#allocation4], 128
    $region29: #{tpu_custom_call.1} parent=1 // pred_fallthru
      _
    %418 = vsyncpa [#allocation3], 1
    %419 = vsyncpa [#allocation6], 1
    %420 = vsyncpa [#allocation4], 1

</llo_original>
